<compile_context>
chip_gen: v7x
topology: tpu7x:2x2x1
jax: 0.10.0
libtpu: 0.0.40
codegen_flags: <defaults>
</compile_context>

<pallas_src>
import functools

import jax
import jax.numpy as jnp
from jax import lax
from jax.experimental import pallas as pl
from jax.experimental.pallas import tpu as pltpu


def _cdiv(a, b):
    return -(-a // b)


def _vmem_scoped_limit_bytes():
    """Scoped-VMEM limit to request, with headroom below physical capacity."""
    try:
        cap = int(pltpu.get_tpu_info().vmem_capacity_bytes)
    except Exception:  # query unavailable: assume the smallest (v7x per-core)
        cap = 64 << 20
    # v5e/v6e: 128 MiB physical -> 64 MiB scoped; v7x: 64 MiB -> 32 MiB.
    return max(cap // 2, cap - (64 << 20))


def _abs_row_tile(n, d, itemsize, budget_bytes):
    """Row tile for the HBM-bound 'absolute' branch (no artificial row cap).

    Per-step footprint: 2 inputs x 2 pipeline buffers (native dtype) plus
    ~3 whole-tile f32 temporaries (upcast S, upcast T, diff).
    """
    per_row = 4 * d * itemsize + 3 * d * 4
    tm = max(8, budget_bytes // max(1, per_row))
    if tm >= n:
        return n
    if tm >= 128:
        return (tm // 128) * 128
    return max(8, (tm // 8) * 8)


def _rel_row_tile(n, d, itemsize, budget_bytes, max_tile=2048):
    """Row/col tile for the 'relative' branch.

    Per-step footprint: 4 inputs x 2 pipeline buffers (native dtype),
    ~4 whole-tile masked/upcast copies (counted as f32), and ~4 f32 (tt, tt)
    gram / sqrt / diff temporaries.  Prefers 256-aligned tiles for the
    2x256^2 MXU on v6e/v7x (128 alignment already fills v5e's 4x128^2).
    """
    def footprint(tt):
        return 8 * tt * d * itemsize + 4 * tt * d * 4 + 4 * tt * tt * 4

    hi = min(n, max_tile)
    if footprint(hi) <= budget_bytes:
        return hi
    for step in (256, 128, 8):
        tt = (hi // step) * step
        while tt >= step:
            if footprint(tt) <= budget_bytes:
                return tt
            tt -= step
    return 8


# -----------------------------------------------------------------------------
# 'absolute' branch: mean_i || S_i - T_i + 1e-6 ||_2
# -----------------------------------------------------------------------------
def _kd_absolute_kernel(s_ref, t_ref, o_ref, *, n_rows):
    i = pl.program_id(0)
    tm = s_ref.shape[0]

    # Upcast in VMEM (VPU casts are cheap) instead of f32 copies in HBM.
    s = s_ref[...].astype(jnp.float32)
    t = t_ref[...].astype(jnp.float32)

    diff = s - t + 1e-6
    per_row = jnp.sqrt(jnp.sum(diff * diff, axis=1, keepdims=True))  # (tm, 1)

    # Mask rows of the (possibly ragged) last tile out of the sum.  jnp.where
    # (vsel) does not propagate NaN/Inf from the unselected padding rows.
    rows = i * tm + lax.broadcasted_iota(jnp.int32, (tm, 1), 0)
    partial = jnp.sum(jnp.where(rows < n_rows, per_row, 0.0))

    # Lane-dense (8, 128) partial block -> unmasked vector stores.
    o_ref[...] = jnp.full(o_ref.shape, partial, jnp.float32)


# -----------------------------------------------------------------------------
# 'relative' branch: || dist(S) - dist(T) ||_F  (+ 0.0 * mean pairwise term)
# Triangular grid: one step per tile pair (i, j) with j >= i.
# -----------------------------------------------------------------------------
def _kd_relative_kernel(itbl_ref, jtbl_ref, si_ref, sj_ref, ti_ref, tj_ref,
                        fro_ref, pair_ref, *, n_rows):
    k = pl.program_id(0)
    i = itbl_ref[k]
    j = jtbl_ref[k]
    tt = si_ref.shape[0]  # row tile == col tile

    row_i = i * tt + lax.broadcasted_iota(jnp.int32, (tt, 1), 0)
    row_j = j * tt + lax.broadcasted_iota(jnp.int32, (tt, 1), 0)
    vi = row_i < n_rows  # (tt, 1)
    vj = row_j < n_rows  # (tt, 1)

    # Keep the MXU operands in their native dtype (bf16 gram runs at full MXU
    # rate; accumulation is f32 via preferred_element_type).  Zero padded rows
    # of ragged edge tiles so garbage never reaches the MXU.
    si = jnp.where(vi, si_ref[...], jnp.zeros_like(si_ref[...]))
    sj = jnp.where(vj, sj_ref[...], jnp.zeros_like(sj_ref[...]))
    ti = jnp.where(vi, ti_ref[...], jnp.zeros_like(ti_ref[...]))
    tj = jnp.where(vj, tj_ref[...], jnp.zeros_like(tj_ref[...]))

    def sq_norm(x):  # (tt, 1) f32 row norms (only this tiny path is upcast)
        xf = x.astype(jnp.float32)
        return jnp.sum(xf * xf, axis=1, keepdims=True)

    def d2_block(xi, xj):
        # Contract dim 1 vs dim 1 (NT matmul) so the (tt, d) j-operand is not
        # transposed through the XLU before hitting the MXU.
        gram = lax.dot_general(xi, xj, (((1,), (1,)), ((), ())),
                               preferred_element_type=jnp.float32)
        d2 = sq_norm(xi) + jnp.transpose(sq_norm(xj)) - 2.0 * gram
        return jnp.maximum(d2, 1e-12)

    a = d2_block(si, sj)  # clamp(dist(S)^2) tile
    b = d2_block(ti, tj)  # clamp(dist(T)^2) tile

    # (sqrt(a) - sqrt(b))^2 == a + b - 2*sqrt(a*b): one EUP sqrt per element
    # instead of two; clamp any tiny negative rounding residue.
    sqdiff = jnp.maximum(a + b - 2.0 * jnp.sqrt(a * b), 0.0)
    mask = jnp.logical_and(vi, jnp.transpose(vj))  # (tt, tt)
    fro_partial = jnp.sum(jnp.where(mask, sqdiff, 0.0))
    # Only the upper triangle of tiles is visited; off-diagonal tiles count
    # twice by symmetry of dist(S) / dist(T).
    fro_partial = jnp.where(i == j, fro_partial, 2.0 * fro_partial)
    fro_ref[...] = jnp.full(fro_ref.shape, fro_partial, jnp.float32)

    # 0.0 * mean(pairwise_distance(S, T)) term (kept for exact NaN/Inf
    # propagation).  Each valid row is counted exactly once: diagonal tiles.
    pair_ref[...] = jnp.zeros(pair_ref.shape, jnp.float32)

    @pl.when(i == j)
    def _():
        dp = si.astype(jnp.float32) - ti.astype(jnp.float32) + 1e-6
        per_row = jnp.sqrt(jnp.sum(dp * dp, axis=1, keepdims=True))
        pair_partial = jnp.sum(jnp.where(vi, per_row, 0.0))
        pair_ref[...] = jnp.full(pair_ref.shape, pair_partial, jnp.float32)


# -----------------------------------------------------------------------------
# Wrapper
# -----------------------------------------------------------------------------
def kd_loss_2(embed_feat_S, embed_feat_T, labels=None, Ttype="absolute",
              row_tile=None, rel_tile=None):
    """Pallas implementation of KDLoss_2.forward (returns loss_distillation).

    `labels` is accepted for API parity but does not influence the returned
    loss in the reference forward.
    """
    # TODO(synk): the reference forward also runs triplet_loss() on S and T
    # (MarginRankingLoss over `labels`) but every result it produces is
    # discarded; those dead computations are intentionally not reproduced.
    assert embed_feat_S.shape == embed_feat_T.shape
    n, d = embed_feat_S.shape
    itemsize = jnp.dtype(embed_feat_S.dtype).itemsize

    scoped_vmem = _vmem_scoped_limit_bytes()
    tile_budget = (scoped_vmem * 3) // 5  # headroom for compiler scratch/temps

    if Ttype == "absolute":
        tm = row_tile if row_tile is not None else _abs_row_tile(
            n, d, itemsize, tile_budget)
        grid_m = _cdiv(n, tm)
        kernel = functools.partial(_kd_absolute_kernel, n_rows=n)
        out = pl.pallas_call(
            kernel,
            out_shape=jax.ShapeDtypeStruct((grid_m * 8, 128), jnp.float32),
            grid_spec=pltpu.PrefetchScalarGridSpec(
                num_scalar_prefetch=0,
                grid=(grid_m,),
                in_specs=[pl.BlockSpec((tm, d), lambda i: (i, 0)),
                          pl.BlockSpec((tm, d), lambda i: (i, 0))],
                out_specs=pl.BlockSpec((8, 128), lambda i: (i, 0)),
            ),
            compiler_params=pltpu.CompilerParams(
                dimension_semantics=("parallel",),
                vmem_limit_bytes=int(scoped_vmem)),
            cost_estimate=pl.CostEstimate(
                flops=4 * n * d + 2 * n,
                transcendentals=n,
                bytes_accessed=2 * n * d * itemsize + grid_m * 8 * 128 * 4),
        )(embed_feat_S, embed_feat_T)
        return jnp.sum(out[::8, 0]) / n

    elif Ttype == "relative":
        tt = rel_tile if rel_tile is not None else _rel_row_tile(
            n, d, itemsize, tile_budget)
        nt = _cdiv(n, tt)
        # Triangular tile schedule: i outer, j = i..nt-1 (consecutive steps
        # share the i-block -> its DMA is revisit-skipped by the pipeline).
        pairs = [(bi, bj) for bi in range(nt) for bj in range(bi, nt)]
        num_tiles = len(pairs)
        i_tbl = jnp.array([p[0] for p in pairs], dtype=jnp.int32)
        j_tbl = jnp.array([p[1] for p in pairs], dtype=jnp.int32)

        kernel = functools.partial(_kd_relative_kernel, n_rows=n)
        fro_out, pair_out = pl.pallas_call(
            kernel,
            out_shape=(jax.ShapeDtypeStruct((num_tiles * 8, 128), jnp.float32),
                       jax.ShapeDtypeStruct((num_tiles * 8, 128), jnp.float32)),
            grid_spec=pltpu.PrefetchScalarGridSpec(
                num_scalar_prefetch=2,
                grid=(num_tiles,),
                in_specs=[
                    pl.BlockSpec((tt, d), lambda k, it, jt: (it[k], 0)),
                    pl.BlockSpec((tt, d), lambda k, it, jt: (jt[k], 0)),
                    pl.BlockSpec((tt, d), lambda k, it, jt: (it[k], 0)),
                    pl.BlockSpec((tt, d), lambda k, it, jt: (jt[k], 0)),
                ],
                out_specs=[
                    pl.BlockSpec((8, 128), lambda k, it, jt: (k, 0)),
                    pl.BlockSpec((8, 128), lambda k, it, jt: (k, 0)),
                ],
            ),
            compiler_params=pltpu.CompilerParams(
                dimension_semantics=("arbitrary",),
                vmem_limit_bytes=int(scoped_vmem)),
            cost_estimate=pl.CostEstimate(
                flops=num_tiles * (4 * tt * tt * d + 16 * tt * tt),
                transcendentals=num_tiles * tt * tt + n,
                bytes_accessed=num_tiles * 4 * tt * d * itemsize
                + num_tiles * 2 * 8 * 128 * 4),
        )(i_tbl, j_tbl, embed_feat_S, embed_feat_S, embed_feat_T, embed_feat_T)

        fro_sum = jnp.sum(fro_out[::8, 0])
        pair_mean = jnp.sum(pair_out[::8, 0]) / n
        # torch.norm(matrix, p=2) with no dim == Frobenius norm (scalar);
        # torch.mean of a scalar is itself.
        return 0.0 * pair_mean + jnp.sqrt(fro_sum)

    else:
        raise ValueError(f"unknown Ttype: {Ttype}")


# -----------------------------------------------------------------------------
# Pure-JAX references (for correctness checks)
# -----------------------------------------------------------------------------
def _reference_absolute(s, t):
    diff = s - t + 1e-6
    return jnp.mean(jnp.sqrt(jnp.sum(diff * diff, axis=1)))


def _reference_relative(s, t):
    def dmat(x):
        sq = jnp.sum(x * x, axis=1, keepdims=True)
        return jnp.sqrt(jnp.maximum(sq + sq.T - 2.0 * (x @ x.T), 1e-12))
    diff = s - t + 1e-6
    pair = jnp.mean(jnp.sqrt(jnp.sum(diff * diff, axis=1)))
    return 0.0 * pair + jnp.sqrt(jnp.sum((dmat(s) - dmat(t)) ** 2))


if __name__ == "__main__":
    key = jax.random.PRNGKey(0)
    k1, k2, k3, k4, k5 = jax.random.split(key, 5)

    # Primary small shapes: batch=8, embed_dim=32 (single full-block grid step).
    n, d = 8, 32
    S = jax.random.normal(k1, (n, d), dtype=jnp.float32)
    T = jax.random.normal(k2, (n, d), dtype=jnp.float32)
    labels = jax.random.randint(k3, (n,), 0, 4)  # unused by the returned loss

    loss_abs = kd_loss_2(S, T, labels, Ttype="absolute")
    jax.block_until_ready(loss_abs)
    ref_abs = _reference_absolute(S, T)
    assert jnp.allclose(loss_abs, ref_abs, rtol=1e-5, atol=1e-5), (loss_abs, ref_abs)

    loss_rel = kd_loss_2(S, T, labels, Ttype="relative")
    jax.block_until_ready(loss_rel)
    ref_rel = _reference_relative(S, T)
    assert jnp.allclose(loss_rel, ref_rel, rtol=1e-4, atol=1e-4), (loss_rel, ref_rel)

    # Multi-tile grid with a ragged last tile: exercises the triangular grid,
    # scalar-prefetched block tables, row/col masking and symmetry doubling.
    n2, d2 = 40, 32
    S2 = jax.random.normal(k4, (n2, d2), dtype=jnp.float32)
    T2 = jax.random.normal(k5, (n2, d2), dtype=jnp.float32)

    loss_abs2 = kd_loss_2(S2, T2, None, Ttype="absolute", row_tile=16)
    jax.block_until_ready(loss_abs2)
    ref_abs2 = _reference_absolute(S2, T2)
    assert jnp.allclose(loss_abs2, ref_abs2, rtol=1e-5, atol=1e-5), (loss_abs2, ref_abs2)

    loss_rel2 = kd_loss_2(S2, T2, None, Ttype="relative", rel_tile=16)
    jax.block_until_ready(loss_rel2)
    ref_rel2 = _reference_relative(S2, T2)
    assert jnp.allclose(loss_rel2, ref_rel2, rtol=1e-4, atol=1e-4), (loss_rel2, ref_rel2)

    # bf16 inputs: exercises the native-dtype MXU gram (f32 accumulation).
    S3 = S2.astype(jnp.bfloat16)
    T3 = T2.astype(jnp.bfloat16)

    loss_rel3 = kd_loss_2(S3, T3, None, Ttype="relative", rel_tile=16)
    jax.block_until_ready(loss_rel3)
    ref_rel3 = _reference_relative(S3.astype(jnp.float32), T3.astype(jnp.float32))
    assert jnp.allclose(loss_rel3, ref_rel3, rtol=1e-3, atol=1e-3), (loss_rel3, ref_rel3)

    loss_abs3 = kd_loss_2(S3, T3, None, Ttype="absolute")
    jax.block_until_ready(loss_abs3)
    ref_abs3 = _reference_absolute(S3.astype(jnp.float32), T3.astype(jnp.float32))
    assert jnp.allclose(loss_abs3, ref_abs3, rtol=1e-3, atol=1e-3), (loss_abs3, ref_abs3)

    print("KERNEL_OK")
</pallas_src>

<mosaic_0001>
module attributes {stable_mosaic.version = 11 : i64} {
  func.func @_kd_absolute_kernel(%arg0: i32, %arg1: memref<8x32xf32, #tpu.memory_space<vmem>>, %arg2: memref<8x32xf32, #tpu.memory_space<vmem>>, %arg3: memref<8x128xf32, #tpu.memory_space<vmem>>) attributes {dimension_semantics = [#tpu.dimension_semantics<parallel>], iteration_bounds = array<i64: 1>, scalar_prefetch = 0 : i64, scratch_operands = 0 : i64, tpu.core_type = #tpu.core_type<tc>, window_params = [{transform_indices = @transform_0, window_bounds = array<i64: 8, 32>}, {transform_indices = @transform_1, window_bounds = array<i64: 8, 32>}, {transform_indices = @transform_2, window_bounds = array<i64: 8, 128>}]} {
    %c0 = arith.constant 0 : index
    %c0_0 = arith.constant 0 : index
    %0 = vector.load %arg1[%c0, %c0_0] : memref<8x32xf32, #tpu.memory_space<vmem>>, vector<8x32xf32>
    %c0_1 = arith.constant 0 : index
    %c0_2 = arith.constant 0 : index
    %1 = vector.load %arg2[%c0_1, %c0_2] : memref<8x32xf32, #tpu.memory_space<vmem>>, vector<8x32xf32>
    %2 = arith.subf %0, %1 : vector<8x32xf32>
    %cst = arith.constant 9.99999997E-7 : f32
    %3 = vector.broadcast %cst : f32 to vector<8x32xf32>
    %4 = arith.addf %2, %3 : vector<8x32xf32>
    %5 = arith.mulf %4, %4 : vector<8x32xf32>
    %cst_3 = arith.constant dense<0.000000e+00> : vector<8xf32>
    %6 = vector.multi_reduction <add>, %5, %cst_3 [1] : vector<8x32xf32> to vector<8xf32>
    %7 = vector.shape_cast %6 : vector<8xf32> to vector<8x1xf32>
    %8 = math.sqrt %7 : vector<8x1xf32>
    %c8_i32 = arith.constant 8 : i32
    %9 = arith.muli %arg0, %c8_i32 : i32
    %10 = tpu.iota {dimensions = array<i32: 0>} : vector<8x1xi32>
    %11 = vector.broadcast %9 : i32 to vector<8x1xi32>
    %12 = arith.addi %11, %10 : vector<8x1xi32>
    %c8_i32_4 = arith.constant 8 : i32
    %13 = vector.broadcast %c8_i32_4 : i32 to vector<8x1xi32>
    %14 = arith.cmpi slt, %12, %13 : vector<8x1xi32>
    %cst_5 = arith.constant 0.000000e+00 : f32
    %15 = vector.broadcast %cst_5 : f32 to vector<8x1xf32>
    %16 = arith.select %14, %8, %15 : vector<8x1xi1>, vector<8x1xf32>
    %17 = vector.shape_cast %16 : vector<8x1xf32> to vector<1x8x1xf32>
    %cst_6 = arith.constant dense<0.000000e+00> : vector<1xf32>
    %18 = vector.multi_reduction <add>, %17, %cst_6 [1, 2] : vector<1x8x1xf32> to vector<1xf32>
    %19 = vector.shape_cast %18 : vector<1xf32> to vector<1x1x1xf32>
    %20 = vector.extract %19[0, 0, 0] : f32 from vector<1x1x1xf32>
    %21 = vector.broadcast %20 : f32 to vector<8x128xf32>
    %c0_7 = arith.constant 0 : index
    %c0_8 = arith.constant 0 : index
    %22 = vector.load %arg3[%c0_7, %c0_8] : memref<8x128xf32, #tpu.memory_space<vmem>>, vector<8x128xf32>
    tpu.vector_store %arg3[%c0_7, %c0_8], %21 {strides = array<i32>} : memref<8x128xf32, #tpu.memory_space<vmem>>, vector<8x128xf32>,
    return
  }
  func.func @transform_0(%arg0: i32) -> (i32, i32) {
    %c0_i32 = arith.constant 0 : i32
    %c0_i32_0 = arith.constant 0 : i32
    return %arg0, %c0_i32 : i32, i32
  }
  func.func @transform_1(%arg0: i32) -> (i32, i32) {
    %c0_i32 = arith.constant 0 : i32
    %c0_i32_0 = arith.constant 0 : i32
    return %arg0, %c0_i32 : i32, i32
  }
  func.func @transform_2(%arg0: i32) -> (i32, i32) {
    %c0_i32 = arith.constant 0 : i32
    %c0_i32_0 = arith.constant 0 : i32
    return %arg0, %c0_i32 : i32, i32
  }
}

</mosaic_0001>

<llo_original>
// kernel: tpu_custom_call.1
$region0: #{tpu_custom_call.1}
  #allocation0 [shape = 'u32[]', space=smem, size = 0x4, offset = 0x4, fixed_abs, tag = 'smem constant byte address 0x4 - core index']
  #allocation1 [shape = 'u32[144,128]{1,0:T(1,128)}', space=vmem, size = 0x12000, scoped, tag = 'internal scratch']
  %s0 = inlined_call_operand.hbm [shape: f32[8,32], index: 0, kind: input, shape index: {}]
  %s1 = inlined_call_operand.hbm [shape: f32[8,32], index: 1, kind: input, shape index: {}]
  %s2 = inlined_call_operand.hbm [shape: f32[8,128], index: 2, kind: output, shape index: {}]
  %s3 = sld [smem:[#allocation0]]
  $region26: #{tpu_custom_call.1} parent=0
    _
  %s5 = ssub.s32 1, %s3
  %s6 = scalar_select 0, %s5, %s3
  $region1: #{tpu_custom_call.1} parent=0
    #allocation2 [shape = 'u8[4096]{0}', space=vmem, size = 0x1000, scoped, tag = 'input window, operand 0, single buffered']
    #allocation3 [shape = 's32[1]{0}', space=sflag, size = 0x4, scoped, tag = 'scoped memory for tpu_custom_call.1']
    #allocation4 [shape = 's32[1]{0}', space=sflag, size = 0x4, scoped, tag = 'scoped memory for tpu_custom_call.1']
    #allocation5 [shape = 'u8[4096]{0}', space=vmem, size = 0x1000, scoped, tag = 'input window, operand 1, single buffered']
    #allocation6 [shape = 's32[1]{0}', space=sflag, size = 0x4, scoped, tag = 'scoped memory for tpu_custom_call.1']
    #allocation7 [shape = 'u8[4096]{0}', space=vmem, size = 0x1000, scoped, tag = 'output window, operand 0, single buffered']
    %7 = vsyncpa [#allocation3], 0
    %8 = vsyncpa [#allocation6], 0
    %9 = vsyncpa [#allocation4], 0
    // Predicated region
    $region2: #{tpu_custom_call.1} parent=1 // pred_check
      _
    $region3: #{tpu_custom_call.1} parent=1 // pred_check_branch
      %11 = sbr.rel (0) target = $region5
    $region4: #{tpu_custom_call.1} parent=1 // pred_region
      %s13 = ssub.s32 128, 128
      %14 = vsyncadd [#allocation3], %s13
      %s16 = sshll.u32 [#allocation2], 4
      %s17 = int_to_ptr.vmem [resolvable:$true] %s16
      %19 = dma.hbm_to_vmem [thread:$0]  %s0, 128, %s17, [#allocation3]
    $region5: #{tpu_custom_call.1} parent=1 // pred_fallthru
      _
    // Predicated region
    $region6: #{tpu_custom_call.1} parent=1 // pred_check
      _
    $region7: #{tpu_custom_call.1} parent=1 // pred_check_branch
      %21 = sbr.rel (0) target = $region9
    $region8: #{tpu_custom_call.1} parent=1 // pred_region
      %s23 = ssub.s32 128, 128
      %24 = vsyncadd [#allocation6], %s23
      %s26 = sshll.u32 [#allocation5], 4
      %s27 = int_to_ptr.vmem [resolvable:$true] %s26
      %29 = dma.hbm_to_vmem [thread:$0]  %s1, 128, %s27, [#allocation6]
    $region9: #{tpu_custom_call.1} parent=1 // pred_fallthru
      _
    // Predicated region
    $region10: #{tpu_custom_call.1} parent=1 // pred_check
      _
    $region11: #{tpu_custom_call.1} parent=1 // pred_check_branch
      %31 = sbr.rel (0) target = $region13
    $region12: #{tpu_custom_call.1} parent=1 // pred_region
      %32 = dma.done [#allocation3], 128
    $region13: #{tpu_custom_call.1} parent=1 // pred_fallthru
      _
    // Predicated region
    $region14: #{tpu_custom_call.1} parent=1 // pred_check
      _
    $region15: #{tpu_custom_call.1} parent=1 // pred_check_branch
      %34 = sbr.rel (0) target = $region17
    $region16: #{tpu_custom_call.1} parent=1 // pred_region
      %35 = dma.done [#allocation6], 128
    $region17: #{tpu_custom_call.1} parent=1 // pred_fallthru
      _
    %v36 = vld [vmem:[#allocation2] sm:$0xff]
    %v37 = vld [vmem:[#allocation5] sm:$0xff]
    %v38 = vsub.f32 %v36, %v37
    %v39 = vadd.f32 %v38, 1e-06
    %v40 = vmul.f32 %v39, %v39
    %vm41 = vcmask 261120
    %v42 = vsel %vm41, %v40, 0.0
    %43 = vadd.xlane.f32.xlu0 %v42
    %v44 = vpop.xlane.xlu0 %43
    %v45 = vrsqrt.pop %v44
    %v46 = vmul.f32 %v44, %v45
    %vm47 = vcmp.eq.f32.partialorder %v44, inf
    %v48 = vsel %vm47, %v44, %v46
    %vm49 = vcmp.eq.f32.partialorder %v44, 0.0
    %v50 = vand.u32 %v44, 2147483648
    %v51 = vsel %vm49, %v50, %v48
    %s52 = smul.u32 0, 8
    %v53 = vlaneseq
    %v54 = vshrl.u32 %v53, 7
    %v55 = vstv %s52
    %v56 = vadd.s32 %v55, %v54
    %vm57 = vcmp.lt.s32.totalorder %v56, 8
    %v58 = vsel %vm57, %v51, 0.0
    %vm59 = vcmask 7168
    %v60 = vsel %vm59, %v58, 0.0
    %61 = vadd.xlane.f32.xlu0 %v60
    %v62 = vpop.xlane.xlu0 %61
    %v63 = vrot.slane %v62, 4
    %v64 = vadd.f32 %v62, %v63
    %v65 = vrot.slane %v64, 2
    %v66 = vadd.f32 %v64, %v65
    %v67 = vrot.slane %v66, 1
    %v68 = vadd.f32 %v66, %v67
    %s69 = vtos %v68
    %v70 = vstv %s69
    %71 = vst [vmem:[#allocation7] sm:$0xff] %v70
    // Predicated region
    $region18: #{tpu_custom_call.1} parent=1 // pred_check
      _
    $region19: #{tpu_custom_call.1} parent=1 // pred_check_branch
      %73 = sbr.rel (0) target = $region21
    $region20: #{tpu_custom_call.1} parent=1 // pred_region
      %s75 = ssub.s32 128, 128
      %76 = vsyncadd [#allocation4], %s75
      %s78 = sshll.u32 [#allocation7], 4
      %s79 = int_to_ptr.vmem [resolvable:$true] %s78
      %81 = dma.vmem_to_hbm [thread:$0]  %s79, 128, %s2, [#allocation4]
    $region21: #{tpu_custom_call.1} parent=1 // pred_fallthru
      _
    // Predicated region
    $region22: #{tpu_custom_call.1} parent=1 // pred_check
      _
    $region23: #{tpu_custom_call.1} parent=1 // pred_check_branch
      %83 = sbr.rel (0) target = $region25
    $region24: #{tpu_custom_call.1} parent=1 // pred_region
      %84 = dma.done [#allocation4], 128
    $region25: #{tpu_custom_call.1} parent=1 // pred_fallthru
      _
    %85 = vsyncpa [#allocation3], 1
    %86 = vsyncpa [#allocation6], 1
    %87 = vsyncpa [#allocation4], 1

</llo_original>
